<compile_context>
chip_gen: v5e
topology: v5e:2x2
jax: 0.10.0
libtpu: 0.0.40
codegen_flags: <defaults>
</compile_context>

<pallas_src>
import functools

import jax
import jax.numpy as jnp
import numpy as np
from jax.experimental import pallas as pl
from jax.experimental.pallas import tpu as pltpu


def _order1_moments_kernel(x_ref, p_ref, o_ref, *, js, A):
    # x_ref: (R, js, A*T)  lane-dense input block
    # p_ref: (A*T, A)      mean-over-T projector, P[a*T + t, a] = 1/T
    # o_ref: (R, js*A)     lane-dense output block
    p = p_ref[...]
    ys = []
    for j in range(js):                      # static unroll; js is small
        xj = x_ref[:, j, :]                  # (R, A*T) static slice
        if j < js - 1:
            xj = jnp.abs(xj)                 # modulus scales only
        # mean over T folded into an MXU matmul: (R, A*T) @ (A*T, A)
        ys.append(jnp.dot(xj, p, preferred_element_type=jnp.float32))
    y = jnp.concatenate(ys, axis=-1)         # (R, js*A)
    o_ref[...] = y.astype(o_ref.dtype)


def order1_moments(Wx, *, target_block_bytes=4 * 1024 * 1024):
    """Wx: (B, N, js, A, T) -> (B, N, js*A, 1), matching Order1Moments."""
    B, N, js, A, T = Wx.shape
    BN = B * N
    K = A * T

    # Lane-dense 3-D view (free reshape, memory is contiguous).
    x2 = Wx.reshape(BN, js, K)

    # Constant mean-over-T projector: P[a*T + t, a] = 1/T.
    P = np.kron(np.eye(A, dtype=np.float32),
                np.ones((T, 1), dtype=np.float32)) / T
    P = jnp.asarray(P, dtype=jnp.float32)    # (A*T, A)

    # Row batch R: ~target_block_bytes per input block, sublane-aligned output,
    # and >= 2 grid steps when there is enough work (v7x megacore).
    itemsize = jnp.dtype(Wx.dtype).itemsize
    row_bytes = js * K * itemsize
    R = max(1, min(BN, target_block_bytes // row_bytes))
    if BN >= 8:
        R = max(8, (R // 8) * 8)
        if BN >= 16:
            R = min(R, max(8, ((BN // 2) // 8) * 8))
    else:
        R = BN
    grid = (pl.cdiv(BN, R),)

    kernel = functools.partial(_order1_moments_kernel, js=js, A=A)
    out = pl.pallas_call(
        kernel,
        out_shape=jax.ShapeDtypeStruct((BN, js * A), Wx.dtype),
        grid=grid,
        in_specs=[
            pl.BlockSpec((R, js, K), lambda i: (i, 0, 0)),
            pl.BlockSpec((K, A), lambda i: (0, 0)),
        ],
        out_specs=pl.BlockSpec((R, js * A), lambda i: (i, 0)),
        compiler_params=pltpu.CompilerParams(
            dimension_semantics=("parallel",),
            vmem_limit_bytes=32 * 1024 * 1024,
        ),
    )(x2, P)
    return out.reshape(B, N, js * A, 1)


def order1_moments_ref(Wx):
    """Pure-JAX reference mirroring the PyTorch module."""
    y_mod = jnp.mean(jnp.abs(Wx[:, :, :-1, :, :]), axis=-1, keepdims=True)
    y_low = jnp.mean(Wx[:, :, -1:, :, :], axis=-1, keepdims=True)
    y = jnp.concatenate([y_mod, y_low], axis=-3)
    return y.reshape(y.shape[0], y.shape[1], -1, y.shape[-1])


if __name__ == "__main__":
    # Order1Moments / TimeAverage have no learnable parameters; nothing to init.
    key = jax.random.PRNGKey(0)
    # B*N = 10 -> R = 8, grid = (2,): exercises the multi-block + partial
    # last-block path while staying small.
    B, N, js, A, T = 2, 5, 4, 8, 16
    Wx = jax.random.normal(key, (B, N, js, A, T), dtype=jnp.float32)

    y = jax.block_until_ready(order1_moments(Wx))
    y_ref = order1_moments_ref(Wx)

    assert y.shape == (B, N, js * A, 1), y.shape
    assert jnp.allclose(y, y_ref, atol=1e-5, rtol=1e-5)
    print("KERNEL_OK")
</pallas_src>

<mosaic_0001>
module attributes {stable_mosaic.version = 11 : i64} {
  func.func @_order1_moments_kernel(%arg0: i32, %arg1: memref<8x4x128xf32, #tpu.memory_space<vmem>>, %arg2: memref<128x8xf32, #tpu.memory_space<vmem>>, %arg3: memref<8x32xf32, #tpu.memory_space<vmem>>) attributes {dimension_semantics = [#tpu.dimension_semantics<parallel>], iteration_bounds = array<i64: 2>, scalar_prefetch = 0 : i64, scratch_operands = 0 : i64, tpu.core_type = #tpu.core_type<tc>, window_params = [{transform_indices = @transform_0, window_bounds = array<i64: 8, 4, 128>}, {pipeline_mode = #tpu.pipeline_mode<synchronous>, transform_indices = @transform_1, window_bounds = array<i64: 128, 8>}, {transform_indices = @transform_2, window_bounds = array<i64: 8, 32>}]} {
    %c0 = arith.constant 0 : index
    %c0_0 = arith.constant 0 : index
    %0 = vector.load %arg2[%c0, %c0_0] : memref<128x8xf32, #tpu.memory_space<vmem>>, vector<128x8xf32>
    %c0_1 = arith.constant 0 : index
    %c0_2 = arith.constant 0 : index
    %c0_3 = arith.constant 0 : index
    %1 = vector.load %arg1[%c0_1, %c0_2, %c0_3] : memref<8x4x128xf32, #tpu.memory_space<vmem>>, vector<8x1x128xf32>
    %2 = vector.shape_cast %1 : vector<8x1x128xf32> to vector<8x128xf32>
    %3 = math.absf %2 : vector<8x128xf32>
    %cst = arith.constant dense<0.000000e+00> : vector<8x8xf32>
    %4 = tpu.matmul %3, %0, %cst {dimension_numbers = #tpu.dot_dimension_numbers<[1], [0], [0], [1], [0, 0, 1, 1], [], []>} : vector<8x128xf32>, vector<128x8xf32>, vector<8x8xf32> -> vector<8x8xf32>
    %c0_4 = arith.constant 0 : index
    %c1 = arith.constant 1 : index
    %c0_5 = arith.constant 0 : index
    %5 = vector.load %arg1[%c0_4, %c1, %c0_5] : memref<8x4x128xf32, #tpu.memory_space<vmem>>, vector<8x1x128xf32>
    %6 = vector.shape_cast %5 : vector<8x1x128xf32> to vector<8x128xf32>
    %7 = math.absf %6 : vector<8x128xf32>
    %cst_6 = arith.constant dense<0.000000e+00> : vector<8x8xf32>
    %8 = tpu.matmul %7, %0, %cst_6 {dimension_numbers = #tpu.dot_dimension_numbers<[1], [0], [0], [1], [0, 0, 1, 1], [], []>} : vector<8x128xf32>, vector<128x8xf32>, vector<8x8xf32> -> vector<8x8xf32>
    %c0_7 = arith.constant 0 : index
    %c2 = arith.constant 2 : index
    %c0_8 = arith.constant 0 : index
    %9 = vector.load %arg1[%c0_7, %c2, %c0_8] : memref<8x4x128xf32, #tpu.memory_space<vmem>>, vector<8x1x128xf32>
    %10 = vector.shape_cast %9 : vector<8x1x128xf32> to vector<8x128xf32>
    %11 = math.absf %10 : vector<8x128xf32>
    %cst_9 = arith.constant dense<0.000000e+00> : vector<8x8xf32>
    %12 = tpu.matmul %11, %0, %cst_9 {dimension_numbers = #tpu.dot_dimension_numbers<[1], [0], [0], [1], [0, 0, 1, 1], [], []>} : vector<8x128xf32>, vector<128x8xf32>, vector<8x8xf32> -> vector<8x8xf32>
    %c0_10 = arith.constant 0 : index
    %c3 = arith.constant 3 : index
    %c0_11 = arith.constant 0 : index
    %13 = vector.load %arg1[%c0_10, %c3, %c0_11] : memref<8x4x128xf32, #tpu.memory_space<vmem>>, vector<8x1x128xf32>
    %14 = vector.shape_cast %13 : vector<8x1x128xf32> to vector<8x128xf32>
    %cst_12 = arith.constant dense<0.000000e+00> : vector<8x8xf32>
    %15 = tpu.matmul %14, %0, %cst_12 {dimension_numbers = #tpu.dot_dimension_numbers<[1], [0], [0], [1], [0, 0, 1, 1], [], []>} : vector<8x128xf32>, vector<128x8xf32>, vector<8x8xf32> -> vector<8x8xf32>
    %16 = tpu.concatenate %4, %8, %12, %15 in 1 : vector<8x8xf32>, vector<8x8xf32>, vector<8x8xf32>, vector<8x8xf32> -> vector<8x32xf32>
    %c0_13 = arith.constant 0 : index
    %c0_14 = arith.constant 0 : index
    %17 = vector.load %arg3[%c0_13, %c0_14] : memref<8x32xf32, #tpu.memory_space<vmem>>, vector<8x32xf32>
    tpu.vector_store %arg3[%c0_13, %c0_14], %16 {strides = array<i32>} : memref<8x32xf32, #tpu.memory_space<vmem>>, vector<8x32xf32>,
    return
  }
  func.func @transform_0(%arg0: i32) -> (i32, i32, i32) {
    %c0_i32 = arith.constant 0 : i32
    %c0_i32_0 = arith.constant 0 : i32
    %c0_i32_1 = arith.constant 0 : i32
    return %arg0, %c0_i32, %c0_i32_0 : i32, i32, i32
  }
  func.func @transform_1(%arg0: i32) -> (i32, i32) {
    %c0_i32 = arith.constant 0 : i32
    %c0_i32_0 = arith.constant 0 : i32
    %c0_i32_1 = arith.constant 0 : i32
    return %c0_i32, %c0_i32_0 : i32, i32
  }
  func.func @transform_2(%arg0: i32) -> (i32, i32) {
    %c0_i32 = arith.constant 0 : i32
    %c0_i32_0 = arith.constant 0 : i32
    return %arg0, %c0_i32 : i32, i32
  }
}

</mosaic_0001>

<llo_original>
// kernel: tpu_custom_call.1
$region0: #{tpu_custom_call.1}
  #allocation0 [shape = 'u32[]', space=smem, size = 0x4, offset = 0x4, fixed_abs, tag = 'smem constant byte address 0x4 - core index']
  #allocation1 [shape = 'u32[72,128]{1,0:T(1,128)}', space=vmem, size = 0x9000, scoped, tag = 'internal scratch']
  %s0 = inlined_call_operand.vmem [shape: f32[10,4,128], index: 0, kind: input, shape index: {}]
  %s1 = inlined_call_operand.vmem [shape: f32[128,8], index: 1, kind: input, shape index: {}]
  %s2 = inlined_call_operand.hbm [shape: f32[10,32], index: 2, kind: output, shape index: {}]
  %s3 = sld [smem:[#allocation0]]
  $region41: #{tpu_custom_call.1} parent=0
    _
  %s5 = ssub.s32 1, %s3
  %s6 = scalar_select 0, %s5, %s3
  $region1: #{tpu_custom_call.1} parent=0
    #allocation2 [shape = 'u8[8192]{0}', space=vmem, size = 0x2000, scoped, tag = 'output window, operand 0']
    #allocation3 [shape = 's32[2]{0}', space=sflag, size = 0x8, scoped, tag = 'scoped memory for tpu_custom_call.1']
    %7 = vsyncpa [#allocation3], 0
    %s8 = scalar_lea.sflag [#allocation3], 1
    %9 = vsyncpa %s8, 0
    loop: start=0, step=1, limit=4
    $region2: #{tpu_custom_call.1} parent=1 // loop_pre_header
      _
    $region3: #{tpu_custom_call.1} parent=1 // loop_header
      %s11 = sphi 0, %s15
      %p12 = scmp.ge.s32.totalorder %s11, 4
      %s21 = sphi 0, %s23
      %s24 = sphi 0, %s21
      %s25 = sphi 0, %s24
      %s41 = sphi 0, %s25
      %s45 = sphi 0, %s45
      %s47 = sphi 0, %s45
      %s48 = sphi 0, %s47
      %s62 = sphi 0, %s48
      %s68 = sphi 0, %s70
      %s71 = sphi 0, %s68
      %s72 = sphi 0, %s71
      %s88 = sphi 0, %s72
    $region4: #{tpu_custom_call.1} parent=1 // loop_header_branch
      %14 = sbr.rel (%p12) target = $region8
    $region5: #{tpu_custom_call.1} parent=1 // loop_body
      %s16 = ssub.s32 %s11, 1
      %s17 = ssub.s32 %s11, 2
      %s18 = sadd.s32 %s11, 1
      %s19 = ssub.s32 %s11, %s18
      %p20 = scmp.eq.s32.totalorder %s19, 0
      %s22 = sadd.s32 %s21, 1
      %s23 = scalar_select %p20, %s21, %s22
      %p26 = pneg %p20
      %p27 = scmp.eq.s32.totalorder %s11, 1
      %p28 = por %p26, %p27
      %p29 = scmp.ne.s32.totalorder %s21, %s24
      %p30 = scmp.eq.s32.totalorder %s11, 0
      %p31 = por %p29, %p30
      %p32 = scmp.ne.s32.totalorder %s21, %s24
      %p33 = scmp.eq.s32.totalorder %s16, 1
      %p34 = por %p32, %p33
      %p35 = scmp.ne.s32.totalorder %s24, %s25
      %p36 = scmp.eq.s32.totalorder %s16, 0
      %p37 = por %p35, %p36
      %p38 = scmp.ne.s32.totalorder %s24, %s25
      %p39 = scmp.eq.s32.totalorder %s17, 1
      %p40 = por %p38, %p39
      %p42 = scmp.ne.s32.totalorder %s25, %s41
      %p43 = scmp.eq.s32.totalorder %s17, 0
      %p44 = por %p42, %p43
      %s46 = sadd.s32 %s45, 1
      %p49 = scmp.eq.s32.totalorder %s11, 1
      %p50 = scmp.ne.s32.totalorder %s45, %s47
      %p51 = scmp.eq.s32.totalorder %s11, 0
      %p52 = por %p50, %p51
      %p53 = scmp.ne.s32.totalorder %s45, %s47
      %p54 = scmp.eq.s32.totalorder %s16, 1
      %p55 = por %p53, %p54
      %p56 = scmp.ne.s32.totalorder %s47, %s48
      %p57 = scmp.eq.s32.totalorder %s16, 0
      %p58 = por %p56, %p57
      %p59 = scmp.ne.s32.totalorder %s47, %s48
      %p60 = scmp.eq.s32.totalorder %s17, 1
      %p61 = por %p59, %p60
      %p63 = scmp.ne.s32.totalorder %s48, %s62
      %p64 = scmp.eq.s32.totalorder %s17, 0
      %p65 = por %p63, %p64
      %s66 = ssub.s32 %s11, %s18
      %p67 = scmp.eq.s32.totalorder %s66, 0
      %s69 = sadd.s32 %s68, 1
      %s70 = scalar_select %p67, %s68, %s69
      %p73 = pneg %p67
      %p74 = scmp.eq.s32.totalorder %s11, 1
      %p75 = por %p73, %p74
      %p76 = scmp.ne.s32.totalorder %s68, %s71
      %p77 = scmp.eq.s32.totalorder %s11, 0
      %p78 = por %p76, %p77
      %p79 = scmp.ne.s32.totalorder %s68, %s71
      %p80 = scmp.eq.s32.totalorder %s16, 1
      %p81 = por %p79, %p80
      %p82 = scmp.ne.s32.totalorder %s71, %s72
      %p83 = scmp.eq.s32.totalorder %s16, 0
      %p84 = por %p82, %p83
      %p85 = scmp.ne.s32.totalorder %s71, %s72
      %p86 = scmp.eq.s32.totalorder %s17, 1
      %p87 = por %p85, %p86
      %p89 = scmp.ne.s32.totalorder %s72, %s88
      %p90 = scmp.eq.s32.totalorder %s17, 0
      %p91 = por %p89, %p90
      %p92 = scmp.le.s32.totalorder 1, %s11
      %p93 = scmp.lt.s32.totalorder %s11, 3
      %p94 = pnand %p92, %p93
      %p95 = pneg %p94
      // Predicated region
      $region9: #{tpu_custom_call.1} parent=5 // pred_check
        _
      $region10: #{tpu_custom_call.1} parent=5 // pred_check_branch
        %97 = sbr.rel (%p94) target = $region12
      $region11: #{tpu_custom_call.1} parent=5 // pred_region
        %s98 = ssub.s32 %s11, 1
        // Predicated region
        $region13: #{tpu_custom_call.1} parent=11 // pred_check
          %p99 = pneg %p58
        $region14: #{tpu_custom_call.1} parent=11 // pred_check_branch
          %101 = sbr.rel (%p99) target = $region16
        $region15: #{tpu_custom_call.1} parent=11 // pred_region
          _
        $region16: #{tpu_custom_call.1} parent=11 // pred_fallthru
          _
      $region12: #{tpu_custom_call.1} parent=5 // pred_fallthru
        _
      %p102 = scmp.lt.s32.totalorder %s11, 2
      // Predicated region
      $region17: #{tpu_custom_call.1} parent=5 // pred_check
        %p103 = pneg %p102
      $region18: #{tpu_custom_call.1} parent=5 // pred_check_branch
        %105 = sbr.rel (%p103) target = $region20
      $region19: #{tpu_custom_call.1} parent=5 // pred_region
        // Predicated region
        $region21: #{tpu_custom_call.1} parent=19 // pred_check
          %p106 = pneg %p31
        $region22: #{tpu_custom_call.1} parent=19 // pred_check_branch
          %108 = sbr.rel (%p106) target = $region24
        $region23: #{tpu_custom_call.1} parent=19 // pred_region
          %s109 = smul.u32 8, %s11
          %s110 = ssub.s32 10, %s109
          %p111 = scmp.lt.s32.totalorder %s110, 8
          %s112 = scalar_select %p111, %s110, 8
          %s113 = smul.u32 4, %s112
          %p114 = scmp.lt.s32.totalorder %s109, 9
          %s115 = scalar_select %p114, %s109, 9
          %s116 = smul.addr %s115, 4
          %s117 = scalar_lea.vmem %s0, %s116
          %s118 = smul.u32 8, %s11
          %s119 = ssub.s32 10, %s118
          %p120 = scmp.lt.s32.totalorder %s119, 8
          %s121 = scalar_select %p120, %s119, 8
          %s122 = smul.u32 4, %s121
        $region24: #{tpu_custom_call.1} parent=19 // pred_fallthru
          _
      $region20: #{tpu_custom_call.1} parent=5 // pred_fallthru
        _
      %p123 = scmp.le.s32.totalorder 1, %s11
      %p124 = scmp.lt.s32.totalorder %s11, 3
      %p125 = pnand %p123, %p124
      %p126 = pneg %p125
      // Predicated region
      $region25: #{tpu_custom_call.1} parent=5 // pred_check
        _
      $region26: #{tpu_custom_call.1} parent=5 // pred_check_branch
        %128 = sbr.rel (%p125) target = $region28
      $region27: #{tpu_custom_call.1} parent=5 // pred_region
        %s129 = ssub.s32 %s11, 1
        %s130 = smul.u32 8, %s16
        %s131 = ssub.s32 10, %s130
        %p132 = scmp.lt.s32.totalorder %s131, 8
        %s133 = scalar_select %p132, %s131, 8
        %s134 = smul.u32 4, %s133
        %p135 = scmp.lt.s32.totalorder %s130, 9
        %s136 = scalar_select %p135, %s130, 9
        %s137 = smul.addr %s136, 4
        %s138 = scalar_lea.vmem %s0, %s137
        %p139 = pneg %p37
        %p140 = pneg %p34
        %p141 = pneg %p58
        %p142 = pneg %p55
        %p143 = pneg %p84
        %p144 = pneg %p81
        %s145 = sand.u32 %s71, 1
        %s146 = scalar_lea.sflag [#allocation3], %s145
        %s147 = sand.u32 %s71, 1
        %s148 = smul.addr %s147, 8
        %s149 = scalar_lea.vmem [#allocation2], %s148
        %s150 = smul.u32 8, %s16
        %s151 = ssub.s32 10, %s150
        %p152 = scmp.lt.s32.totalorder %s151, 8
        %s153 = scalar_select %p152, %s151, 8
        %s154 = smul.u32 4, %s153
        %p155 = scmp.lt.s32.totalorder %s150, 9
        %s156 = scalar_select %p155, %s150, 9
        %s157 = smul.addr %s156, 4
        %s158 = scalar_lea.vmem %s0, %s157
        %s159 = smul.u32 8, %s16
        %s160 = ssub.s32 10, %s159
        %p161 = scmp.lt.s32.totalorder %s160, 8
        %s162 = scalar_select %p161, %s160, 8
        %s163 = smul.u32 4, %s162
        %v164 = vld [vmem:[%s1] sm:$0xff]
        %v165 = vld [vmem:[%s1 + $0x8] sm:$0xff]
        %v166 = vld [vmem:[%s1 + $0x10] sm:$0xff]
        %v167 = vld [vmem:[%s1 + $0x18] sm:$0xff]
        %v168 = vld [vmem:[%s1 + $0x20] sm:$0xff]
        %v169 = vld [vmem:[%s1 + $0x28] sm:$0xff]
        %v170 = vld [vmem:[%s1 + $0x30] sm:$0xff]
        %v171 = vld [vmem:[%s1 + $0x38] sm:$0xff]
        %v172 = vld [vmem:[%s1 + $0x40] sm:$0xff]
        %v173 = vld [vmem:[%s1 + $0x48] sm:$0xff]
        %v174 = vld [vmem:[%s1 + $0x50] sm:$0xff]
        %v175 = vld [vmem:[%s1 + $0x58] sm:$0xff]
        %v176 = vld [vmem:[%s1 + $0x60] sm:$0xff]
        %v177 = vld [vmem:[%s1 + $0x68] sm:$0xff]
        %v178 = vld [vmem:[%s1 + $0x70] sm:$0xff]
        %v179 = vld [vmem:[%s1 + $0x78] sm:$0xff]
        %v180 = vld [vmem:[%s158] sm:$0x1]
        %v181 = vld [vmem:[%s158 + $0x4] sm:$0x1]
        %v182 = vld [vmem:[%s158 + $0x8] sm:$0x1]
        %v183 = vld [vmem:[%s158 + $0xc] sm:$0x1]
        %v184 = vld [vmem:[%s158 + $0x10] sm:$0x1]
        %v185 = vld [vmem:[%s158 + $0x14] sm:$0x1]
        %v186 = vld [vmem:[%s158 + $0x18] sm:$0x1]
        %v187 = vld [vmem:[%s158 + $0x1c] sm:$0x1]
        %v188 = vand.u32 2147483647, %v180
        %v189 = vand.u32 2147483647, %v181
        %v190 = vand.u32 2147483647, %v182
        %v191 = vand.u32 2147483647, %v183
        %v192 = vand.u32 2147483647, %v184
        %v193 = vand.u32 2147483647, %v185
        %v194 = vand.u32 2147483647, %v186
        %v195 = vand.u32 2147483647, %v187
        %v204 = vrot.slane %v189, 7
        %vm205 = vcmask 1041409
        %v206 = vsel %vm205, %v204, %v188
        %v207 = vrot.slane %v190, 6
        %vm208 = vcmask 1042434
        %v209 = vsel %vm208, %v207, %v206
        %v210 = vrot.slane %v191, 5
        %vm211 = vcmask 1043459
        %v212 = vsel %vm211, %v210, %v209
        %v213 = vrot.slane %v192, 4
        %vm214 = vcmask 1044484
        %v215 = vsel %vm214, %v213, %v212
        %v216 = vrot.slane %v193, 3
        %vm217 = vcmask 1045509
        %v218 = vsel %vm217, %v216, %v215
        %v219 = vrot.slane %v194, 2
        %vm220 = vcmask 1046534
        %v221 = vsel %vm220, %v219, %v218
        %v222 = vrot.slane %v195, 1
        %vm223 = vcmask 1047559
        %v224 = vsel %vm223, %v222, %v221
        %226 = vmatpush.msra.mxu0 %v179
        %227 = vmatpush.msra.mxu0 %v178
        %228 = vmatpush.msra.mxu0 %v177
        %229 = vmatpush.msra.mxu0 %v176
        %230 = vmatpush.msra.mxu0 %v175
        %231 = vmatpush.msra.mxu0 %v174
        %232 = vmatpush.msra.mxu0 %v173
        %233 = vmatpush.msra.mxu0 %v172
        %234 = vmatpush.msra.mxu0 %v171
        %235 = vmatpush.msra.mxu0 %v170
        %236 = vmatpush.msra.mxu0 %v169
        %237 = vmatpush.msra.mxu0 %v168
        %238 = vmatpush.msra.mxu0 %v167
        %239 = vmatpush.msra.mxu0 %v166
        %240 = vmatpush.msra.mxu0 %v165
        %241 = vmatpush.msra.mxu0 %v164
        %242 = vmatmul.f32.gmra.mxu0 %v224
        %v243 = vpop.f32.mrf.mxu0
        %v244 = vadd.f32 0.0, %v243
        %245 = vdwg.mxu0
        %v246 = vld [vmem:[%s158 + $0x1] sm:$0x1]
        %v247 = vld [vmem:[%s158 + $0x5] sm:$0x1]
        %v248 = vld [vmem:[%s158 + $0x9] sm:$0x1]
        %v249 = vld [vmem:[%s158 + $0xd] sm:$0x1]
        %v250 = vld [vmem:[%s158 + $0x11] sm:$0x1]
        %v251 = vld [vmem:[%s158 + $0x15] sm:$0x1]
        %v252 = vld [vmem:[%s158 + $0x19] sm:$0x1]
        %v253 = vld [vmem:[%s158 + $0x1d] sm:$0x1]
        %v254 = vand.u32 2147483647, %v246
        %v255 = vand.u32 2147483647, %v247
        %v256 = vand.u32 2147483647, %v248
        %v257 = vand.u32 2147483647, %v249
        %v258 = vand.u32 2147483647, %v250
        %v259 = vand.u32 2147483647, %v251
        %v260 = vand.u32 2147483647, %v252
        %v261 = vand.u32 2147483647, %v253
        %v270 = vrot.slane %v255, 7
        %v271 = vsel %vm205, %v270, %v254
        %v272 = vrot.slane %v256, 6
        %v273 = vsel %vm208, %v272, %v271
        %v274 = vrot.slane %v257, 5
        %v275 = vsel %vm211, %v274, %v273
        %v276 = vrot.slane %v258, 4
        %v277 = vsel %vm214, %v276, %v275
        %v278 = vrot.slane %v259, 3
        %v279 = vsel %vm217, %v278, %v277
        %v280 = vrot.slane %v260, 2
        %v281 = vsel %vm220, %v280, %v279
        %v282 = vrot.slane %v261, 1
        %v283 = vsel %vm223, %v282, %v281
        %285 = vmatpush.msra.mxu0 %v179
        %286 = vmatpush.msra.mxu0 %v178
        %287 = vmatpush.msra.mxu0 %v177
        %288 = vmatpush.msra.mxu0 %v176
        %289 = vmatpush.msra.mxu0 %v175
        %290 = vmatpush.msra.mxu0 %v174
        %291 = vmatpush.msra.mxu0 %v173
        %292 = vmatpush.msra.mxu0 %v172
        %293 = vmatpush.msra.mxu0 %v171
        %294 = vmatpush.msra.mxu0 %v170
        %295 = vmatpush.msra.mxu0 %v169
        %296 = vmatpush.msra.mxu0 %v168
        %297 = vmatpush.msra.mxu0 %v167
        %298 = vmatpush.msra.mxu0 %v166
        %299 = vmatpush.msra.mxu0 %v165
        %300 = vmatpush.msra.mxu0 %v164
        %301 = vmatmul.f32.gmra.mxu0 %v283
        %v302 = vpop.f32.mrf.mxu0
        %v303 = vadd.f32 0.0, %v302
        %304 = vdwg.mxu0
        %v305 = vld [vmem:[%s158 + $0x2] sm:$0x1]
        %v306 = vld [vmem:[%s158 + $0x6] sm:$0x1]
        %v307 = vld [vmem:[%s158 + $0xa] sm:$0x1]
        %v308 = vld [vmem:[%s158 + $0xe] sm:$0x1]
        %v309 = vld [vmem:[%s158 + $0x12] sm:$0x1]
        %v310 = vld [vmem:[%s158 + $0x16] sm:$0x1]
        %v311 = vld [vmem:[%s158 + $0x1a] sm:$0x1]
        %v312 = vld [vmem:[%s158 + $0x1e] sm:$0x1]
        %v313 = vand.u32 2147483647, %v305
        %v314 = vand.u32 2147483647, %v306
        %v315 = vand.u32 2147483647, %v307
        %v316 = vand.u32 2147483647, %v308
        %v317 = vand.u32 2147483647, %v309
        %v318 = vand.u32 2147483647, %v310
        %v319 = vand.u32 2147483647, %v311
        %v320 = vand.u32 2147483647, %v312
        %v329 = vrot.slane %v314, 7
        %v330 = vsel %vm205, %v329, %v313
        %v331 = vrot.slane %v315, 6
        %v332 = vsel %vm208, %v331, %v330
        %v333 = vrot.slane %v316, 5
        %v334 = vsel %vm211, %v333, %v332
        %v335 = vrot.slane %v317, 4
        %v336 = vsel %vm214, %v335, %v334
        %v337 = vrot.slane %v318, 3
        %v338 = vsel %vm217, %v337, %v336
        %v339 = vrot.slane %v319, 2
        %v340 = vsel %vm220, %v339, %v338
        %v341 = vrot.slane %v320, 1
        %v342 = vsel %vm223, %v341, %v340
        %344 = vmatpush.msra.mxu0 %v179
        %345 = vmatpush.msra.mxu0 %v178
        %346 = vmatpush.msra.mxu0 %v177
        %347 = vmatpush.msra.mxu0 %v176
        %348 = vmatpush.msra.mxu0 %v175
        %349 = vmatpush.msra.mxu0 %v174
        %350 = vmatpush.msra.mxu0 %v173
        %351 = vmatpush.msra.mxu0 %v172
        %352 = vmatpush.msra.mxu0 %v171
        %353 = vmatpush.msra.mxu0 %v170
        %354 = vmatpush.msra.mxu0 %v169
        %355 = vmatpush.msra.mxu0 %v168
        %356 = vmatpush.msra.mxu0 %v167
        %357 = vmatpush.msra.mxu0 %v166
        %358 = vmatpush.msra.mxu0 %v165
        %359 = vmatpush.msra.mxu0 %v164
        %360 = vmatmul.f32.gmra.mxu0 %v342
        %v361 = vpop.f32.mrf.mxu0
        %v362 = vadd.f32 0.0, %v361
        %363 = vdwg.mxu0
        %v364 = vld [vmem:[%s158 + $0x3] sm:$0x1]
        %v365 = vld [vmem:[%s158 + $0x7] sm:$0x1]
        %v366 = vld [vmem:[%s158 + $0xb] sm:$0x1]
        %v367 = vld [vmem:[%s158 + $0xf] sm:$0x1]
        %v368 = vld [vmem:[%s158 + $0x13] sm:$0x1]
        %v369 = vld [vmem:[%s158 + $0x17] sm:$0x1]
        %v370 = vld [vmem:[%s158 + $0x1b] sm:$0x1]
        %v371 = vld [vmem:[%s158 + $0x1f] sm:$0x1]
        %v380 = vrot.slane %v365, 7
        %v381 = vsel %vm205, %v380, %v364
        %v382 = vrot.slane %v366, 6
        %v383 = vsel %vm208, %v382, %v381
        %v384 = vrot.slane %v367, 5
        %v385 = vsel %vm211, %v384, %v383
        %v386 = vrot.slane %v368, 4
        %v387 = vsel %vm214, %v386, %v385
        %v388 = vrot.slane %v369, 3
        %v389 = vsel %vm217, %v388, %v387
        %v390 = vrot.slane %v370, 2
        %v391 = vsel %vm220, %v390, %v389
        %v392 = vrot.slane %v371, 1
        %v393 = vsel %vm223, %v392, %v391
        %395 = vmatpush.msra.mxu0 %v179
        %396 = vmatpush.msra.mxu0 %v178
        %397 = vmatpush.msra.mxu0 %v177
        %398 = vmatpush.msra.mxu0 %v176
        %399 = vmatpush.msra.mxu0 %v175
        %400 = vmatpush.msra.mxu0 %v174
        %401 = vmatpush.msra.mxu0 %v173
        %402 = vmatpush.msra.mxu0 %v172
        %403 = vmatpush.msra.mxu0 %v171
        %404 = vmatpush.msra.mxu0 %v170
        %405 = vmatpush.msra.mxu0 %v169
        %406 = vmatpush.msra.mxu0 %v168
        %407 = vmatpush.msra.mxu0 %v167
        %408 = vmatpush.msra.mxu0 %v166
        %409 = vmatpush.msra.mxu0 %v165
        %410 = vmatpush.msra.mxu0 %v164
        %411 = vmatmul.f32.gmra.mxu0 %v393
        %v412 = vpop.f32.mrf.mxu0
        %v413 = vadd.f32 0.0, %v412
        %414 = vdwg.mxu0
        %416 = vrot.lane.b32.xlu0 %v303, 8
        %v417 = vpop.permute.xlu0 %416
        %420 = vrot.lane.b32.xlu0 %v362, 16
        %v421 = vpop.permute.xlu0 %420
        %424 = vrot.lane.b32.xlu0 %v413, 24
        %v425 = vpop.permute.xlu0 %424
        %vm427 = vcmask 64512
        %v428 = vsel %vm427, %v244, %v417
        %vm429 = vcmask 130048
        %v430 = vsel %vm429, %v428, %v421
        %vm431 = vcmask 195584
        %v432 = vsel %vm431, %v430, %v425
        %vm433 = vcmask 261120
        %434 = vst.msk [vmem:[%s149] sm:$0xff] %vm433, %v432
        %s435 = sand.u32 %s71, 1
        %s436 = scalar_lea.sflag [#allocation3], %s435
        %s437 = sand.u32 %s71, 1
        %s438 = smul.addr %s437, 8
        %s439 = scalar_lea.vmem [#allocation2], %s438
        // Predicated region
        $region29: #{tpu_custom_call.1} parent=27 // pred_check
          %p440 = pneg %p81
        $region30: #{tpu_custom_call.1} parent=27 // pred_check_branch
          %442 = sbr.rel (%p440) target = $region32
        $region31: #{tpu_custom_call.1} parent=27 // pred_region
          %444 = vsyncadd %s436, 0
          %s445 = smul.addr %s16, 8
          %s446 = scalar_lea.hbm %s2, %s445
          %s448 = sshll.u32 %s439, 4
          %s449 = int_to_ptr.vmem [resolvable:$true] %s448
          %s450 = sshll.u32 %s446, 4
          %s451 = int_to_ptr.hbm [resolvable:$true] %s450
          %453 = dma.vmem_to_hbm [thread:$0]  %s449, 128, %s451, %s436
        $region32: #{tpu_custom_call.1} parent=27 // pred_fallthru
          _
      $region28: #{tpu_custom_call.1} parent=5 // pred_fallthru
        _
      %p454 = scmp.le.s32.totalorder 2, %s11
      // Predicated region
      $region33: #{tpu_custom_call.1} parent=5 // pred_check
        %p455 = pneg %p454
      $region34: #{tpu_custom_call.1} parent=5 // pred_check_branch
        %457 = sbr.rel (%p455) target = $region36
      $region35: #{tpu_custom_call.1} parent=5 // pred_region
        %s458 = ssub.s32 %s11, 2
        // Predicated region
        $region37: #{tpu_custom_call.1} parent=35 // pred_check
          %p459 = pneg %p87
        $region38: #{tpu_custom_call.1} parent=35 // pred_check_branch
          %461 = sbr.rel (%p459) target = $region40
        $region39: #{tpu_custom_call.1} parent=35 // pred_region
          %s462 = sand.u32 %s72, 1
          %s463 = scalar_lea.sflag [#allocation3], %s462
          %s464 = sand.u32 %s72, 1
          %s465 = smul.addr %s464, 8
          %s466 = scalar_lea.vmem [#allocation2], %s465
          %468 = dma.done %s463, 128
        $region40: #{tpu_custom_call.1} parent=35 // pred_fallthru
          _
      $region36: #{tpu_custom_call.1} parent=5 // pred_fallthru
        _
    $region6: #{tpu_custom_call.1} parent=1 // loop_footer
      %s15 = sadd.s32 1, %s11
    $region7: #{tpu_custom_call.1} parent=1 // loop_footer_branch
      %10 = sbr.rel target = $region3
    $region8: #{tpu_custom_call.1} parent=1 // loop_exit
      _
    %469 = vsyncpa [#allocation3], 1
    %s470 = scalar_lea.sflag [#allocation3], 1
    %471 = vsyncpa %s470, 1

</llo_original>
